<compile_context>
chip_gen: v5e
topology: v5e:2x2
jax: 0.10.0
libtpu: 0.0.40
codegen_flags: <defaults>
</compile_context>

<pallas_src>
import math

import jax
import jax.numpy as jnp
from jax import lax
from jax.experimental import pallas as pl
from jax.experimental.pallas import tpu as pltpu

_INV_4PI2 = 1.0 / (4.0 * math.pi * math.pi)
# Flip to True for extra EUP relief via the approximate vrcp (costs ~1e-3
# relative error on the loss); kept exact here so the reference check is tight.
_APPROX_RECIP = False


def _mdn_loss_kernel(x_ref, p_ref, loss_ref):
    """x_ref: [3, TB]; p_ref: [8, K, TB]; loss_ref: [1, TB] (per-element -log p)."""
    x1 = x_ref[0:1, :]        # [1, TB] -> broadcasts over the K sublanes
    x2 = x_ref[1:2, :]
    x3 = x_ref[2:3, :]

    mu1 = p_ref[0]            # [K, TB]
    mu2 = p_ref[1]
    mu3 = p_ref[2]
    s1 = p_ref[3]
    s2 = p_ref[4]
    s3 = p_ref[5]
    rho = p_ref[6]
    theta = p_ref[7]

    # One reciprocal per sigma, reused for both the normalized residuals and
    # the Gaussian normalizers (replaces the reference's ~8 divides + sqrt).
    inv_s1 = pl.reciprocal(s1, approx=_APPROX_RECIP)
    inv_s2 = pl.reciprocal(s2, approx=_APPROX_RECIP)
    inv_s3 = pl.reciprocal(s3, approx=_APPROX_RECIP)

    n1 = (x1 - mu1) * inv_s1
    n2 = (x2 - mu2) * inv_s2
    n3 = (x3 - mu3) * inv_s3

    neg_rho = 1.0 - rho * rho
    inv_neg_rho = pl.reciprocal(neg_rho, approx=_APPROX_RECIP)

    z2 = n1 * n1 + n2 * n2 - 2.0 * rho * n1 * n2
    # Fused exponential: exp(-z2 / (2*(1-rho^2)) - z3^2 / 2) as one exp.
    expo = -0.5 * (z2 * inv_neg_rho + n3 * n3)

    # 1 / (2*pi*s1*s2*sqrt(1-rho^2))  *  1 / (2*pi*s3)
    inv_denom = (inv_s1 * inv_s2 * inv_s3) * lax.rsqrt(neg_rho) * _INV_4PI2

    mixture = jnp.exp(expo) * inv_denom * theta           # [K, TB]
    total = jnp.sum(mixture, axis=0, keepdims=True)       # [1, TB] (sublane reduce)
    loss_ref[...] = -jnp.log(total + 1e-06)


def _round_up(n: int, m: int) -> int:
    return ((n + m - 1) // m) * m


def mdn_loss(x, mu1, mu2, mu3, s1, s2, s3, rho, theta, *, block_b: int = 512):
    """MDN loss.  x: [B, 3]; all other args: [B, K].  Returns scalar f32."""
    B, K = mu1.shape
    f32 = jnp.float32

    # Lane-dense packing: batch in lanes, K in sublanes, 8 parameters stacked.
    params = jnp.stack(
        [mu1.T, mu2.T, mu3.T, s1.T, s2.T, s3.T, rho.T, theta.T], axis=0
    ).astype(f32)                                    # [8, K, B]
    xt = jnp.transpose(x).astype(f32)                # [3, B]

    tb = min(block_b, _round_up(B, 128))             # lane-dense tile (mult. of 128)
    b_pad = _round_up(B, tb)
    if b_pad != B:
        # Pad with benign finite values; padded lanes are sliced off before
        # the final mean, so they never contribute to the loss.
        params = jnp.pad(params, ((0, 0), (0, 0), (0, b_pad - B)),
                         constant_values=0.5)
        xt = jnp.pad(xt, ((0, 0), (0, b_pad - B)), constant_values=0.0)

    per_elem = pl.pallas_call(
        _mdn_loss_kernel,
        out_shape=jax.ShapeDtypeStruct((1, b_pad), f32),
        grid=(b_pad // tb,),
        in_specs=[
            pl.BlockSpec((3, tb), lambda i: (0, i)),
            pl.BlockSpec((8, K, tb), lambda i: (0, 0, i)),
        ],
        out_specs=pl.BlockSpec((1, tb), lambda i: (0, i)),
        compiler_params=pltpu.CompilerParams(
            dimension_semantics=("parallel",)),
    )(xt, params)

    # Tiny final reduction; divide by the TRUE batch size, not the padded one.
    return jnp.mean(per_elem[0, :B])


def _mdn_loss_ref(x, mu1, mu2, mu3, s1, s2, s3, rho, theta):
    """Pure-JAX reference mirroring the PyTorch module, for sanity checking."""
    x1, x2, x3 = x[:, 0:1], x[:, 1:2], x[:, 2:3]
    two_pi = 2.0 * math.pi
    norm1, norm2 = x1 - mu1, x2 - mu2
    s1s2 = s1 * s2
    z2 = (norm1 / s1) ** 2 + (norm2 / s2) ** 2 - 2.0 * rho * norm1 * norm2 / s1s2
    neg_rho = 1.0 - rho ** 2
    p2 = jnp.exp(-z2 / (2.0 * neg_rho)) / (two_pi * s1s2 * jnp.sqrt(neg_rho))
    p1 = jnp.exp(-((x3 - mu3) / s3) ** 2 / 2.0) / (two_pi * s3)
    total = jnp.sum(p2 * p1 * theta, axis=1)
    return jnp.mean(-jnp.log(total + 1e-06))


def _make_inputs(key, B, K):
    keys = jax.random.split(key, 9)
    x = jax.random.normal(keys[0], (B, 3), dtype=jnp.float32)
    mu1 = jax.random.normal(keys[1], (B, K), dtype=jnp.float32)
    mu2 = jax.random.normal(keys[2], (B, K), dtype=jnp.float32)
    mu3 = jax.random.normal(keys[3], (B, K), dtype=jnp.float32)
    # standard deviations: strictly positive
    s1 = jnp.exp(0.1 * jax.random.normal(keys[4], (B, K), dtype=jnp.float32)) + 0.5
    s2 = jnp.exp(0.1 * jax.random.normal(keys[5], (B, K), dtype=jnp.float32)) + 0.5
    s3 = jnp.exp(0.1 * jax.random.normal(keys[6], (B, K), dtype=jnp.float32)) + 0.5
    # correlation in (-1, 1)
    rho = 0.9 * jnp.tanh(jax.random.normal(keys[7], (B, K), dtype=jnp.float32))
    # mixture weights: softmax over components
    theta = jax.nn.softmax(jax.random.normal(keys[8], (B, K), dtype=jnp.float32), axis=1)
    return (x, mu1, mu2, mu3, s1, s2, s3, rho, theta)


if __name__ == "__main__":
    # Small primary case (matches the module's [batch, 3] / [batch, K] shapes).
    args_small = _make_inputs(jax.random.PRNGKey(0), B=8, K=16)
    loss = mdn_loss(*args_small)
    jax.block_until_ready(loss)
    ref = _mdn_loss_ref(*args_small)
    assert jnp.allclose(loss, ref, rtol=1e-4, atol=1e-4), (loss, ref)

    # Multi-tile / padded case (exercises the batch grid, padding, and the
    # global-B mean that the review flagged as a tiling correctness risk).
    args_big = _make_inputs(jax.random.PRNGKey(1), B=1000, K=20)
    loss_big = mdn_loss(*args_big)
    jax.block_until_ready(loss_big)
    ref_big = _mdn_loss_ref(*args_big)
    assert jnp.allclose(loss_big, ref_big, rtol=1e-4, atol=1e-4), (loss_big, ref_big)

    print("KERNEL_OK")
</pallas_src>

<mosaic_0001>
module attributes {stable_mosaic.version = 11 : i64} {
  func.func @_mdn_loss_kernel(%arg0: i32, %arg1: memref<3x128xf32, #tpu.memory_space<vmem>>, %arg2: memref<8x16x128xf32, #tpu.memory_space<vmem>>, %arg3: memref<1x128xf32, #tpu.memory_space<vmem>>) attributes {dimension_semantics = [#tpu.dimension_semantics<parallel>], iteration_bounds = array<i64: 1>, scalar_prefetch = 0 : i64, scratch_operands = 0 : i64, tpu.core_type = #tpu.core_type<tc>, window_params = [{transform_indices = @transform_0, window_bounds = array<i64: 3, 128>}, {transform_indices = @transform_1, window_bounds = array<i64: 8, 16, 128>}, {transform_indices = @transform_2, window_bounds = array<i64: 1, 128>}]} {
    %c0 = arith.constant 0 : index
    %c0_0 = arith.constant 0 : index
    %0 = vector.load %arg1[%c0, %c0_0] : memref<3x128xf32, #tpu.memory_space<vmem>>, vector<1x128xf32>
    %c1 = arith.constant 1 : index
    %c0_1 = arith.constant 0 : index
    %1 = vector.load %arg1[%c1, %c0_1] : memref<3x128xf32, #tpu.memory_space<vmem>>, vector<1x128xf32>
    %c2 = arith.constant 2 : index
    %c0_2 = arith.constant 0 : index
    %2 = vector.load %arg1[%c2, %c0_2] : memref<3x128xf32, #tpu.memory_space<vmem>>, vector<1x128xf32>
    %c0_3 = arith.constant 0 : index
    %c0_4 = arith.constant 0 : index
    %c0_5 = arith.constant 0 : index
    %3 = vector.load %arg2[%c0_3, %c0_4, %c0_5] : memref<8x16x128xf32, #tpu.memory_space<vmem>>, vector<1x16x128xf32>
    %4 = vector.shape_cast %3 : vector<1x16x128xf32> to vector<16x128xf32>
    %c1_6 = arith.constant 1 : index
    %c0_7 = arith.constant 0 : index
    %c0_8 = arith.constant 0 : index
    %5 = vector.load %arg2[%c1_6, %c0_7, %c0_8] : memref<8x16x128xf32, #tpu.memory_space<vmem>>, vector<1x16x128xf32>
    %6 = vector.shape_cast %5 : vector<1x16x128xf32> to vector<16x128xf32>
    %c2_9 = arith.constant 2 : index
    %c0_10 = arith.constant 0 : index
    %c0_11 = arith.constant 0 : index
    %7 = vector.load %arg2[%c2_9, %c0_10, %c0_11] : memref<8x16x128xf32, #tpu.memory_space<vmem>>, vector<1x16x128xf32>
    %8 = vector.shape_cast %7 : vector<1x16x128xf32> to vector<16x128xf32>
    %c3 = arith.constant 3 : index
    %c0_12 = arith.constant 0 : index
    %c0_13 = arith.constant 0 : index
    %9 = vector.load %arg2[%c3, %c0_12, %c0_13] : memref<8x16x128xf32, #tpu.memory_space<vmem>>, vector<1x16x128xf32>
    %10 = vector.shape_cast %9 : vector<1x16x128xf32> to vector<16x128xf32>
    %c4 = arith.constant 4 : index
    %c0_14 = arith.constant 0 : index
    %c0_15 = arith.constant 0 : index
    %11 = vector.load %arg2[%c4, %c0_14, %c0_15] : memref<8x16x128xf32, #tpu.memory_space<vmem>>, vector<1x16x128xf32>
    %12 = vector.shape_cast %11 : vector<1x16x128xf32> to vector<16x128xf32>
    %c5 = arith.constant 5 : index
    %c0_16 = arith.constant 0 : index
    %c0_17 = arith.constant 0 : index
    %13 = vector.load %arg2[%c5, %c0_16, %c0_17] : memref<8x16x128xf32, #tpu.memory_space<vmem>>, vector<1x16x128xf32>
    %14 = vector.shape_cast %13 : vector<1x16x128xf32> to vector<16x128xf32>
    %c6 = arith.constant 6 : index
    %c0_18 = arith.constant 0 : index
    %c0_19 = arith.constant 0 : index
    %15 = vector.load %arg2[%c6, %c0_18, %c0_19] : memref<8x16x128xf32, #tpu.memory_space<vmem>>, vector<1x16x128xf32>
    %16 = vector.shape_cast %15 : vector<1x16x128xf32> to vector<16x128xf32>
    %c7 = arith.constant 7 : index
    %c0_20 = arith.constant 0 : index
    %c0_21 = arith.constant 0 : index
    %17 = vector.load %arg2[%c7, %c0_20, %c0_21] : memref<8x16x128xf32, #tpu.memory_space<vmem>>, vector<1x16x128xf32>
    %18 = vector.shape_cast %17 : vector<1x16x128xf32> to vector<16x128xf32>
    %19 = tpu.reciprocal %10 : vector<16x128xf32> -> vector<16x128xf32>
    %20 = tpu.reciprocal %12 : vector<16x128xf32> -> vector<16x128xf32>
    %21 = tpu.reciprocal %14 : vector<16x128xf32> -> vector<16x128xf32>
    %22 = vector.broadcast %0 : vector<1x128xf32> to vector<16x128xf32>
    %23 = arith.subf %22, %4 : vector<16x128xf32>
    %24 = arith.mulf %23, %19 : vector<16x128xf32>
    %25 = vector.broadcast %1 : vector<1x128xf32> to vector<16x128xf32>
    %26 = arith.subf %25, %6 : vector<16x128xf32>
    %27 = arith.mulf %26, %20 : vector<16x128xf32>
    %28 = vector.broadcast %2 : vector<1x128xf32> to vector<16x128xf32>
    %29 = arith.subf %28, %8 : vector<16x128xf32>
    %30 = arith.mulf %29, %21 : vector<16x128xf32>
    %31 = arith.mulf %16, %16 : vector<16x128xf32>
    %cst = arith.constant 1.000000e+00 : f32
    %32 = vector.broadcast %cst : f32 to vector<16x128xf32>
    %33 = arith.subf %32, %31 : vector<16x128xf32>
    %34 = tpu.reciprocal %33 : vector<16x128xf32> -> vector<16x128xf32>
    %35 = arith.mulf %24, %24 : vector<16x128xf32>
    %36 = arith.mulf %27, %27 : vector<16x128xf32>
    %37 = arith.addf %35, %36 : vector<16x128xf32>
    %cst_22 = arith.constant 2.000000e+00 : f32
    %38 = vector.broadcast %cst_22 : f32 to vector<16x128xf32>
    %39 = arith.mulf %38, %16 : vector<16x128xf32>
    %40 = arith.mulf %39, %24 : vector<16x128xf32>
    %41 = arith.mulf %40, %27 : vector<16x128xf32>
    %42 = arith.subf %37, %41 : vector<16x128xf32>
    %43 = arith.mulf %42, %34 : vector<16x128xf32>
    %44 = arith.mulf %30, %30 : vector<16x128xf32>
    %45 = arith.addf %43, %44 : vector<16x128xf32>
    %cst_23 = arith.constant -5.000000e-01 : f32
    %46 = vector.broadcast %cst_23 : f32 to vector<16x128xf32>
    %47 = arith.mulf %46, %45 : vector<16x128xf32>
    %48 = arith.mulf %19, %20 : vector<16x128xf32>
    %49 = arith.mulf %48, %21 : vector<16x128xf32>
    %50 = math.rsqrt %33 : vector<16x128xf32>
    %51 = arith.mulf %49, %50 : vector<16x128xf32>
    %cst_24 = arith.constant 0.0253302958 : f32
    %52 = vector.broadcast %cst_24 : f32 to vector<16x128xf32>
    %53 = arith.mulf %51, %52 : vector<16x128xf32>
    %54 = math.exp %47 : vector<16x128xf32>
    %55 = arith.mulf %54, %53 : vector<16x128xf32>
    %56 = arith.mulf %55, %18 : vector<16x128xf32>
    %cst_25 = arith.constant dense<0.000000e+00> : vector<128xf32>
    %57 = vector.multi_reduction <add>, %56, %cst_25 [0] : vector<16x128xf32> to vector<128xf32>
    %58 = vector.shape_cast %57 : vector<128xf32> to vector<1x128xf32>
    %cst_26 = arith.constant 9.99999997E-7 : f32
    %59 = vector.broadcast %cst_26 : f32 to vector<1x128xf32>
    %60 = arith.addf %58, %59 : vector<1x128xf32>
    %61 = math.log %60 : vector<1x128xf32>
    %cst_27 = arith.constant 0.000000e+00 : f32
    %62 = vector.broadcast %cst_27 : f32 to vector<1x128xf32>
    %63 = arith.subf %62, %61 : vector<1x128xf32>
    %c0_28 = arith.constant 0 : index
    %c0_29 = arith.constant 0 : index
    %64 = vector.load %arg3[%c0_28, %c0_29] : memref<1x128xf32, #tpu.memory_space<vmem>>, vector<1x128xf32>
    tpu.vector_store %arg3[%c0_28, %c0_29], %63 {strides = array<i32>} : memref<1x128xf32, #tpu.memory_space<vmem>>, vector<1x128xf32>,
    return
  }
  func.func @transform_0(%arg0: i32) -> (i32, i32) {
    %c0_i32 = arith.constant 0 : i32
    %c0_i32_0 = arith.constant 0 : i32
    return %c0_i32, %arg0 : i32, i32
  }
  func.func @transform_1(%arg0: i32) -> (i32, i32, i32) {
    %c0_i32 = arith.constant 0 : i32
    %c0_i32_0 = arith.constant 0 : i32
    %c0_i32_1 = arith.constant 0 : i32
    return %c0_i32, %c0_i32_0, %arg0 : i32, i32, i32
  }
  func.func @transform_2(%arg0: i32) -> (i32, i32) {
    %c0_i32 = arith.constant 0 : i32
    %c0_i32_0 = arith.constant 0 : i32
    return %c0_i32, %arg0 : i32, i32
  }
}

</mosaic_0001>

<llo_original>
// kernel: tpu_custom_call.1
$region0: #{tpu_custom_call.1}
  #allocation0 [shape = 'u32[]', space=smem, size = 0x4, offset = 0x4, fixed_abs, tag = 'smem constant byte address 0x4 - core index']
  #allocation1 [shape = 'u32[72,128]{1,0:T(1,128)}', space=vmem, size = 0x9000, scoped, tag = 'internal scratch']
  %s0 = inlined_call_operand.hbm [shape: f32[3,128], index: 0, kind: input, shape index: {}]
  %s1 = inlined_call_operand.hbm [shape: f32[8,16,128], index: 1, kind: input, shape index: {}]
  %s2 = inlined_call_operand.hbm [shape: f32[1,128], index: 2, kind: output, shape index: {}]
  %s3 = sld [smem:[#allocation0]]
  $region26: #{tpu_custom_call.1} parent=0
    _
  %s5 = ssub.s32 1, %s3
  %s6 = scalar_select 0, %s5, %s3
  $region1: #{tpu_custom_call.1} parent=0
    #allocation2 [shape = 'u8[2048]{0}', space=vmem, size = 0x800, scoped, tag = 'input window, operand 0, single buffered']
    #allocation3 [shape = 's32[1]{0}', space=sflag, size = 0x4, scoped, tag = 'scoped memory for tpu_custom_call.1']
    #allocation4 [shape = 's32[1]{0}', space=sflag, size = 0x4, scoped, tag = 'scoped memory for tpu_custom_call.1']
    #allocation5 [shape = 'u8[65536]{0}', space=vmem, size = 0x10000, scoped, tag = 'input window, operand 1, single buffered']
    #allocation6 [shape = 's32[1]{0}', space=sflag, size = 0x4, scoped, tag = 'scoped memory for tpu_custom_call.1']
    #allocation7 [shape = 'u8[512]{0}', space=vmem, size = 0x400, scoped, tag = 'output window, operand 0, single buffered']
    %7 = vsyncpa [#allocation3], 0
    %8 = vsyncpa [#allocation6], 0
    %9 = vsyncpa [#allocation4], 0
    // Predicated region
    $region2: #{tpu_custom_call.1} parent=1 // pred_check
      _
    $region3: #{tpu_custom_call.1} parent=1 // pred_check_branch
      %11 = sbr.rel (0) target = $region5
    $region4: #{tpu_custom_call.1} parent=1 // pred_region
      %13 = vsyncadd [#allocation3], 0
      %s15 = sshll.u32 %s0, 4
      %s16 = int_to_ptr.hbm [resolvable:$true] %s15
      %s17 = sshll.u32 [#allocation2], 4
      %s18 = int_to_ptr.vmem [resolvable:$true] %s17
      %20 = dma.hbm_to_vmem [thread:$0]  %s16, 64, %s18, [#allocation3]
    $region5: #{tpu_custom_call.1} parent=1 // pred_fallthru
      _
    // Predicated region
    $region6: #{tpu_custom_call.1} parent=1 // pred_check
      _
    $region7: #{tpu_custom_call.1} parent=1 // pred_check_branch
      %22 = sbr.rel (0) target = $region9
    $region8: #{tpu_custom_call.1} parent=1 // pred_region
      %24 = vsyncadd [#allocation6], 0
      %s25 = sshll.u32 %s1, 4
      %s26 = int_to_ptr.hbm [resolvable:$true] %s25
      %s27 = sshll.u32 [#allocation5], 4
      %s28 = int_to_ptr.vmem [resolvable:$true] %s27
      %33 = dma.hbm_to_vmem [thread:$0]  %s26, 2048, %s28, [#allocation6], 128, 128, 8
    $region9: #{tpu_custom_call.1} parent=1 // pred_fallthru
      _
    // Predicated region
    $region10: #{tpu_custom_call.1} parent=1 // pred_check
      _
    $region11: #{tpu_custom_call.1} parent=1 // pred_check_branch
      %35 = sbr.rel (0) target = $region13
    $region12: #{tpu_custom_call.1} parent=1 // pred_region
      %37 = dma.done [#allocation3], 64
    $region13: #{tpu_custom_call.1} parent=1 // pred_fallthru
      _
    // Predicated region
    $region14: #{tpu_custom_call.1} parent=1 // pred_check
      _
    $region15: #{tpu_custom_call.1} parent=1 // pred_check_branch
      %39 = sbr.rel (0) target = $region17
    $region16: #{tpu_custom_call.1} parent=1 // pred_region
      %41 = dma.done [#allocation6], 2048
    $region17: #{tpu_custom_call.1} parent=1 // pred_fallthru
      _
    %v42 = vld [vmem:[#allocation2] sm:$0x1]
    %v43 = vld [vmem:[#allocation2 + $0x1] sm:$0x1]
    %v44 = vld [vmem:[#allocation2 + $0x2] sm:$0x1]
    %v45 = vld [vmem:[#allocation5] sm:$0xff]
    %v46 = vld [vmem:[#allocation5 + $0x8] sm:$0xff]
    %s47 = scalar_lea.vmem [#allocation5], 16
    %v48 = vld [vmem:[%s47] sm:$0xff]
    %v49 = vld [vmem:[%s47 + $0x8] sm:$0xff]
    %s50 = scalar_lea.vmem [#allocation5], 32
    %v51 = vld [vmem:[%s50] sm:$0xff]
    %v52 = vld [vmem:[%s50 + $0x8] sm:$0xff]
    %s53 = scalar_lea.vmem [#allocation5], 48
    %v54 = vld [vmem:[%s53] sm:$0xff]
    %v55 = vld [vmem:[%s53 + $0x8] sm:$0xff]
    %s56 = scalar_lea.vmem [#allocation5], 64
    %v57 = vld [vmem:[%s56] sm:$0xff]
    %v58 = vld [vmem:[%s56 + $0x8] sm:$0xff]
    %s59 = scalar_lea.vmem [#allocation5], 80
    %v60 = vld [vmem:[%s59] sm:$0xff]
    %v61 = vld [vmem:[%s59 + $0x8] sm:$0xff]
    %s62 = scalar_lea.vmem [#allocation5], 96
    %v63 = vld [vmem:[%s62] sm:$0xff]
    %v64 = vld [vmem:[%s62 + $0x8] sm:$0xff]
    %s65 = scalar_lea.vmem [#allocation5], 112
    %v66 = vld [vmem:[%s65] sm:$0xff]
    %v67 = vld [vmem:[%s65 + $0x8] sm:$0xff]
    %v68 = vrcp.pop %v54
    %v69 = vmul.f32 %v54, %v68
    %v70 = vsub.f32 1.0, %v69
    %v71 = vmul.f32 %v68, %v70
    %v72 = vadd.f32 %v68, %v71
    %vm73 = vweird.f32 %v54
    %vm74 = vweird.f32 %v68
    %vm75 = vmor %vm73, %vm74
    %v76 = vsel %vm75, %v68, %v72
    %v77 = vand.u32 2147483647, %v54
    %vm78 = vcmp.eq.f32.partialorder %v77, 8.507059e+37
    %v79 = vand.u32 %v54, 2147483648
    %v80 = vor.u32 1.1754944e-38, %v79
    %v81 = vsel %vm78, %v80, %v76
    %v82 = vrcp.pop %v55
    %v83 = vmul.f32 %v55, %v82
    %v84 = vsub.f32 1.0, %v83
    %v85 = vmul.f32 %v82, %v84
    %v86 = vadd.f32 %v82, %v85
    %vm87 = vweird.f32 %v55
    %vm88 = vweird.f32 %v82
    %vm89 = vmor %vm87, %vm88
    %v90 = vsel %vm89, %v82, %v86
    %v91 = vand.u32 2147483647, %v55
    %vm92 = vcmp.eq.f32.partialorder %v91, 8.507059e+37
    %v93 = vand.u32 %v55, 2147483648
    %v94 = vor.u32 1.1754944e-38, %v93
    %v95 = vsel %vm92, %v94, %v90
    %v96 = vrcp.pop %v57
    %v97 = vmul.f32 %v57, %v96
    %v98 = vsub.f32 1.0, %v97
    %v99 = vmul.f32 %v96, %v98
    %v100 = vadd.f32 %v96, %v99
    %vm101 = vweird.f32 %v57
    %vm102 = vweird.f32 %v96
    %vm103 = vmor %vm101, %vm102
    %v104 = vsel %vm103, %v96, %v100
    %v105 = vand.u32 2147483647, %v57
    %vm106 = vcmp.eq.f32.partialorder %v105, 8.507059e+37
    %v107 = vand.u32 %v57, 2147483648
    %v108 = vor.u32 1.1754944e-38, %v107
    %v109 = vsel %vm106, %v108, %v104
    %v110 = vrcp.pop %v58
    %v111 = vmul.f32 %v58, %v110
    %v112 = vsub.f32 1.0, %v111
    %v113 = vmul.f32 %v110, %v112
    %v114 = vadd.f32 %v110, %v113
    %vm115 = vweird.f32 %v58
    %vm116 = vweird.f32 %v110
    %vm117 = vmor %vm115, %vm116
    %v118 = vsel %vm117, %v110, %v114
    %v119 = vand.u32 2147483647, %v58
    %vm120 = vcmp.eq.f32.partialorder %v119, 8.507059e+37
    %v121 = vand.u32 %v58, 2147483648
    %v122 = vor.u32 1.1754944e-38, %v121
    %v123 = vsel %vm120, %v122, %v118
    %v124 = vrcp.pop %v60
    %v125 = vmul.f32 %v60, %v124
    %v126 = vsub.f32 1.0, %v125
    %v127 = vmul.f32 %v124, %v126
    %v128 = vadd.f32 %v124, %v127
    %vm129 = vweird.f32 %v60
    %vm130 = vweird.f32 %v124
    %vm131 = vmor %vm129, %vm130
    %v132 = vsel %vm131, %v124, %v128
    %v133 = vand.u32 2147483647, %v60
    %vm134 = vcmp.eq.f32.partialorder %v133, 8.507059e+37
    %v135 = vand.u32 %v60, 2147483648
    %v136 = vor.u32 1.1754944e-38, %v135
    %v137 = vsel %vm134, %v136, %v132
    %v138 = vrcp.pop %v61
    %v139 = vmul.f32 %v61, %v138
    %v140 = vsub.f32 1.0, %v139
    %v141 = vmul.f32 %v138, %v140
    %v142 = vadd.f32 %v138, %v141
    %vm143 = vweird.f32 %v61
    %vm144 = vweird.f32 %v138
    %vm145 = vmor %vm143, %vm144
    %v146 = vsel %vm145, %v138, %v142
    %v147 = vand.u32 2147483647, %v61
    %vm148 = vcmp.eq.f32.partialorder %v147, 8.507059e+37
    %v149 = vand.u32 %v61, 2147483648
    %v150 = vor.u32 1.1754944e-38, %v149
    %v151 = vsel %vm148, %v150, %v146
    %v152 = vperm.slane %v42, 0
    %v153 = vsub.f32 %v152, %v45
    %v154 = vsub.f32 %v152, %v46
    %v155 = vmul.f32 %v153, %v81
    %v156 = vmul.f32 %v154, %v95
    %v157 = vperm.slane %v43, 0
    %v158 = vsub.f32 %v157, %v48
    %v159 = vsub.f32 %v157, %v49
    %v160 = vmul.f32 %v158, %v109
    %v161 = vmul.f32 %v159, %v123
    %v162 = vperm.slane %v44, 0
    %v163 = vsub.f32 %v162, %v51
    %v164 = vsub.f32 %v162, %v52
    %v165 = vmul.f32 %v163, %v137
    %v166 = vmul.f32 %v164, %v151
    %v167 = vmul.f32 %v63, %v63
    %v168 = vmul.f32 %v64, %v64
    %v169 = vsub.f32 1.0, %v167
    %v170 = vsub.f32 1.0, %v168
    %v171 = vrcp.pop %v169
    %v172 = vmul.f32 %v169, %v171
    %v173 = vsub.f32 1.0, %v172
    %v174 = vmul.f32 %v171, %v173
    %v175 = vadd.f32 %v171, %v174
    %vm176 = vweird.f32 %v169
    %vm177 = vweird.f32 %v171
    %vm178 = vmor %vm176, %vm177
    %v179 = vsel %vm178, %v171, %v175
    %v180 = vand.u32 2147483647, %v169
    %vm181 = vcmp.eq.f32.partialorder %v180, 8.507059e+37
    %v182 = vand.u32 %v169, 2147483648
    %v183 = vor.u32 1.1754944e-38, %v182
    %v184 = vsel %vm181, %v183, %v179
    %v185 = vrcp.pop %v170
    %v186 = vmul.f32 %v170, %v185
    %v187 = vsub.f32 1.0, %v186
    %v188 = vmul.f32 %v185, %v187
    %v189 = vadd.f32 %v185, %v188
    %vm190 = vweird.f32 %v170
    %vm191 = vweird.f32 %v185
    %vm192 = vmor %vm190, %vm191
    %v193 = vsel %vm192, %v185, %v189
    %v194 = vand.u32 2147483647, %v170
    %vm195 = vcmp.eq.f32.partialorder %v194, 8.507059e+37
    %v196 = vand.u32 %v170, 2147483648
    %v197 = vor.u32 1.1754944e-38, %v196
    %v198 = vsel %vm195, %v197, %v193
    %v199 = vmul.f32 %v155, %v155
    %v200 = vmul.f32 %v156, %v156
    %v201 = vmul.f32 %v160, %v160
    %v202 = vmul.f32 %v161, %v161
    %v203 = vadd.f32 %v199, %v201
    %v204 = vadd.f32 %v200, %v202
    %v205 = vmul.f32 %v63, 2.0
    %v206 = vmul.f32 %v64, 2.0
    %v207 = vmul.f32 %v205, %v155
    %v208 = vmul.f32 %v206, %v156
    %v209 = vmul.f32 %v207, %v160
    %v210 = vmul.f32 %v208, %v161
    %v211 = vsub.f32 %v203, %v209
    %v212 = vsub.f32 %v204, %v210
    %v213 = vmul.f32 %v211, %v184
    %v214 = vmul.f32 %v212, %v198
    %v215 = vmul.f32 %v165, %v165
    %v216 = vmul.f32 %v166, %v166
    %v217 = vadd.f32 %v213, %v215
    %v218 = vadd.f32 %v214, %v216
    %v219 = vmul.f32 %v217, -0.5
    %v220 = vmul.f32 %v218, -0.5
    %v221 = vmul.f32 %v81, %v109
    %v222 = vmul.f32 %v95, %v123
    %v223 = vmul.f32 %v221, %v137
    %v224 = vmul.f32 %v222, %v151
    %v225 = vrsqrt.pop %v169
    %v226 = vmul.f32 %v225, %v169
    %v227 = vmul.f32 %v226, %v225
    %v228 = vmul.f32 0.5, %v227
    %v229 = vsub.f32 1.5, %v228
    %v230 = vmul.f32 %v225, %v229
    %vm231 = vweird.f32 %v169
    %vm232 = vweird.f32 %v225
    %vm233 = vmor %vm231, %vm232
    %v234 = vsel %vm233, %v225, %v230
    %v235 = vrsqrt.pop %v170
    %v236 = vmul.f32 %v235, %v170
    %v237 = vmul.f32 %v236, %v235
    %v238 = vmul.f32 0.5, %v237
    %v239 = vsub.f32 1.5, %v238
    %v240 = vmul.f32 %v235, %v239
    %vm241 = vweird.f32 %v170
    %vm242 = vweird.f32 %v235
    %vm243 = vmor %vm241, %vm242
    %v244 = vsel %vm243, %v235, %v240
    %v245 = vmul.f32 %v223, %v234
    %v246 = vmul.f32 %v224, %v244
    %v247 = vmul.f32 %v245, 0.025330296
    %v248 = vmul.f32 %v246, 0.025330296
    %v249 = vmul.f32 %v219, 1.442695
    %v250 = vpow.pop %v249
    %v251 = vmul.f32 %v220, 1.442695
    %v252 = vpow.pop %v251
    %v253 = vmul.f32 %v250, %v247
    %v254 = vmul.f32 %v252, %v248
    %v255 = vmul.f32 %v253, %v66
    %v256 = vmul.f32 %v254, %v67
    %v257 = vadd.f32 %v255, %v256
    %v258 = vrot.slane %v257, 4
    %v259 = vadd.f32 %v257, %v258
    %v260 = vrot.slane %v259, 2
    %v261 = vadd.f32 %v259, %v260
    %v262 = vrot.slane %v261, 1
    %v263 = vadd.f32 %v261, %v262
    %v264 = vadd.f32 %v263, 1e-06
    %v265 = vlog2.pop %v264
    %v266 = vmul.f32 %v265, 0.6931472
    %v267 = vsub.f32 0.0, %v266
    %268 = vst [vmem:[#allocation7] sm:$0x1] %v267
    // Predicated region
    $region18: #{tpu_custom_call.1} parent=1 // pred_check
      _
    $region19: #{tpu_custom_call.1} parent=1 // pred_check_branch
      %270 = sbr.rel (0) target = $region21
    $region20: #{tpu_custom_call.1} parent=1 // pred_region
      %272 = vsyncadd [#allocation4], 0
      %s274 = sshll.u32 [#allocation7], 4
      %s275 = int_to_ptr.vmem [resolvable:$true] %s274
      %s276 = sshll.u32 %s2, 4
      %s277 = int_to_ptr.hbm [resolvable:$true] %s276
      %279 = dma.vmem_to_hbm [thread:$0]  %s275, 16, %s277, [#allocation4]
    $region21: #{tpu_custom_call.1} parent=1 // pred_fallthru
      _
    // Predicated region
    $region22: #{tpu_custom_call.1} parent=1 // pred_check
      _
    $region23: #{tpu_custom_call.1} parent=1 // pred_check_branch
      %281 = sbr.rel (0) target = $region25
    $region24: #{tpu_custom_call.1} parent=1 // pred_region
      %283 = dma.done [#allocation4], 16
    $region25: #{tpu_custom_call.1} parent=1 // pred_fallthru
      _
    %284 = vsyncpa [#allocation3], 1
    %285 = vsyncpa [#allocation6], 1
    %286 = vsyncpa [#allocation4], 1

</llo_original>
